<compile_context>
chip_gen: v6e
topology: v6e:2x2x1
jax: 0.10.0
libtpu: 0.0.40
codegen_flags: <defaults>
</compile_context>

<pallas_src>
import math
import functools

import jax
import jax.numpy as jnp
from jax import lax
from jax.experimental import pallas as pl
from jax.experimental.pallas import tpu as pltpu

ATOM_FDIM = 75   # matches torch.zeros((1, 75)) in MP.message_pass
DEPTH = 3        # args.depth


def _tpu_kind():
    try:
        return jax.devices()[0].device_kind.lower()
    except Exception:
        return ""


def _vmem_budget_bytes():
    """70% of physical VMEM (leaves headroom for compiler-internal scratch)."""
    try:
        cap = int(pltpu.get_tpu_info().vmem_capacity_bytes)
    except Exception:
        cap = 64 << 20          # conservative fallback (v7x per-TC physical VMEM)
    return int(cap * 0.7)


def _pick_tb(B, Np, Fp, in_bytes, w_bytes, tb_max, vmem_budget, min_grid):
    """Molecules per grid step, sized against the real VMEM working set."""
    per_tb = (2 * Np * Np * 2            # adj block (bf16), double-buffered
              + 2 * Np * Fp * in_bytes   # atom block, double-buffered
              + 2 * Fp * 4               # output block (f32), double-buffered
              + 6 * Np * Fp * 4)         # live f32/bf16 temps in the unrolled depth loop
    fixed = 4 * Fp * Fp * w_bytes + 2 * Fp * 4 + (1 << 20)   # weights + bias + slack
    tb = max(1, (vmem_budget - fixed) // per_tb)
    tb = min(tb, tb_max)
    # Keep the parallel grid >= min_grid steps when B allows (hides DMA, uses both
    # TensorCores on v7x); never force TB below 8 via this bound.
    tb = min(tb, max(8, -(-B // min_grid)))
    tb = min(tb, max(1, B))
    if 8 <= tb < B:
        tb = (tb // 8) * 8               # 8-aligned sublane output blocks -> unmasked stores
    return int(tb)


def _make_kernel(n_atoms, n_pad, mxu_dtype, fuse_k):
    """fuse_k=True -> single K=2*Fp matmul (v6e/v7x); False -> split K=Fp (v5e)."""

    def _finish(H, TB, Fp, o_ref):
        Hb = H.reshape(TB, n_pad, Fp)
        if n_pad != n_atoms:
            # padded (fake) atoms pick up relu(b_u) != 0; mask them out of the readout sum
            row = lax.broadcasted_iota(jnp.int32, (1, n_pad, 1), 1)
            Hb = jnp.where(row < n_atoms, Hb, 0.0)
        # mol_vec per molecule -> lane-dense (TB, Fp) output slab
        o_ref[...] = jnp.sum(Hb, axis=1)

    if fuse_k:
        def kernel(adj_ref, h_ref, w_ref, bu_ref, o_ref):
            TB = h_ref.shape[0]
            Fp = h_ref.shape[2]
            A = adj_ref[...].astype(mxu_dtype)           # (TB, Np, Np)
            w = w_ref[...]                               # (2Fp, Fp) = [W1^T ; W2^T] padded
            bu = bu_ref[...]                             # (1, Fp) f32 (sublane-broadcast add)
            H0 = h_ref[...].astype(jnp.float32).reshape(TB * n_pad, Fp)   # f32 state

            def step(_, Hflat):
                Hm = Hflat.astype(mxu_dtype)
                # message passing: M[b] = adj[b] @ H[b]   (batched over TB)
                M = lax.dot_general(
                    A, Hm.reshape(TB, n_pad, Fp),
                    dimension_numbers=(((2,), (1,)), ((0,), (0,))),
                    preferred_element_type=jnp.float32)
                # U layer: relu([H | M] @ [W1^T ; W2^T] + b_u)  -- K = 2*Fp fills the MXU
                HM = jnp.concatenate(
                    [Hm, M.reshape(TB * n_pad, Fp).astype(mxu_dtype)], axis=-1)
                pre = jnp.dot(HM, w, preferred_element_type=jnp.float32) + bu
                return jnp.maximum(pre, 0.0)

            H = lax.fori_loop(0, DEPTH, step, H0, unroll=True)   # DEPTH=3, fully unrolled
            _finish(H, TB, Fp, o_ref)
    else:
        def kernel(adj_ref, h_ref, w1_ref, w2_ref, bu_ref, o_ref):
            TB = h_ref.shape[0]
            Fp = h_ref.shape[2]
            A = adj_ref[...].astype(mxu_dtype)
            w1 = w1_ref[...]                             # (Fp, Fp) padded W_u[:, :F].T
            w2 = w2_ref[...]                             # (Fp, Fp) padded W_u[:, F:].T
            bu = bu_ref[...]                             # (1, Fp) f32
            H0 = h_ref[...].astype(jnp.float32).reshape(TB * n_pad, Fp)

            def step(_, Hflat):
                Hm = Hflat.astype(mxu_dtype)
                M = lax.dot_general(
                    A, Hm.reshape(TB, n_pad, Fp),
                    dimension_numbers=(((2,), (1,)), ((0,), (0,))),
                    preferred_element_type=jnp.float32)
                pre = (jnp.dot(Hm, w1, preferred_element_type=jnp.float32)
                       + jnp.dot(M.reshape(TB * n_pad, Fp).astype(mxu_dtype), w2,
                                 preferred_element_type=jnp.float32)
                       + bu)
                return jnp.maximum(pre, 0.0)

            H = lax.fori_loop(0, DEPTH, step, H0, unroll=True)
            _finish(H, TB, Fp, o_ref)

    return kernel


def mpnn_forward(adj, atoms, w_u, b_u, w_nn, b_nn, *,
                 tb_max=128, mxu_dtype=jnp.bfloat16):
    """adj: (B,N,N), atoms: (B,N,F), w_u: (F,2F), b_u: (F,), w_nn: (1,F), b_nn: (1,)"""
    B, N, F = atoms.shape
    Fp = ((F + 127) // 128) * 128            # lane / MXU-K alignment
    Np = ((N + 7) // 8) * 8                  # sublane alignment

    kind = _tpu_kind()
    is_v5e = ("v5e" in kind) or ("v5 lite" in kind) or ("v5lite" in kind)
    is_v7 = "v7" in kind
    fuse_k = not is_v5e                      # K=2*Fp fills the 256-deep v6e/v7x MXU
    min_grid = 8 if is_v7 else 4             # v7x has 2 TensorCores

    in_bytes = jnp.dtype(mxu_dtype).itemsize
    vmem_budget = _vmem_budget_bytes()
    TB = _pick_tb(B, Np, Fp, in_bytes, in_bytes, tb_max, vmem_budget, min_grid)
    Bp = -(-B // TB) * TB

    # Pad batch/atoms/features in one jnp.pad each (fuses with the cast under jit).
    # Zeros in padded adjacency rows/cols and in padded W/bias lanes keep padded
    # lanes exactly zero -> no leakage into real atoms. bf16 is exact for 0/1 adj.
    adj_p = jnp.pad(adj.astype(jnp.bfloat16),
                    ((0, Bp - B), (0, Np - N), (0, Np - N)))
    atoms_p = jnp.pad(atoms.astype(mxu_dtype),
                      ((0, Bp - B), (0, Np - N), (0, Fp - F)))

    # split cat-linear exactly: cat(H, M) @ W_u^T == H @ W1^T + M @ W2^T == [H|M] @ [W1^T;W2^T]
    w1t = jnp.pad(jnp.transpose(w_u[:, :F]), ((0, Fp - F), (0, Fp - F)))
    w2t = jnp.pad(jnp.transpose(w_u[:, F:]), ((0, Fp - F), (0, Fp - F)))
    bu = jnp.pad(b_u, (0, Fp - F)).reshape(1, Fp).astype(jnp.float32)

    kernel = _make_kernel(N, Np, mxu_dtype, fuse_k)

    flops = Bp * DEPTH * (2 * Np * Np * Fp + 4 * Np * Fp * Fp)
    bytes_accessed = (Bp * Np * Np * 2            # adj (bf16)
                      + Bp * Np * Fp * in_bytes   # atoms
                      + Bp * Fp * 4               # mol-vector output
                      + 2 * Fp * Fp * in_bytes    # weights
                      + Fp * 4)                   # bias

    if fuse_k:
        w_args = (jnp.concatenate([w1t, w2t], axis=0).astype(mxu_dtype),)
        w_specs = [pl.BlockSpec((2 * Fp, Fp), lambda b: (0, 0))]
    else:
        w_args = (w1t.astype(mxu_dtype), w2t.astype(mxu_dtype))
        w_specs = [pl.BlockSpec((Fp, Fp), lambda b: (0, 0)),
                   pl.BlockSpec((Fp, Fp), lambda b: (0, 0))]

    mol = pl.pallas_call(
        kernel,
        out_shape=jax.ShapeDtypeStruct((Bp, Fp), jnp.float32),
        grid_spec=pltpu.PrefetchScalarGridSpec(
            num_scalar_prefetch=0,
            grid=(Bp // TB,),
            in_specs=[
                pl.BlockSpec((TB, Np, Np), lambda b: (b, 0, 0)),   # adjacency batch
                pl.BlockSpec((TB, Np, Fp), lambda b: (b, 0, 0)),   # atom-feature batch
                *w_specs,                                          # resident weight tiles
                pl.BlockSpec((1, Fp), lambda b: (0, 0)),           # b_u (padded)
            ],
            out_specs=pl.BlockSpec((TB, Fp), lambda b: (b, 0)),    # lane-dense mol vecs
        ),
        compiler_params=pltpu.CompilerParams(
            dimension_semantics=("parallel",),
            vmem_limit_bytes=int(vmem_budget)),
        cost_estimate=pl.CostEstimate(
            flops=int(flops), transcendentals=0, bytes_accessed=int(bytes_accessed)),
    )(adj_p, atoms_p, *w_args, bu)

    # readout Linear(F, 1) + bias as one lane-dense XLA matmul in the wrapper
    out = mol[:B, :F] @ jnp.transpose(w_nn) + b_nn.reshape(1, 1)   # (B, 1)
    return out


def mpnn_reference(adj, atoms, w_u, b_u, w_nn, b_nn):
    H = atoms
    for _ in range(DEPTH):
        M = jnp.einsum("bij,bjf->bif", adj, H)
        cat = jnp.concatenate([H, M], axis=-1)                  # (B, N, 2F)
        H = jax.nn.relu(jnp.einsum("bng,fg->bnf", cat, w_u) + b_u)
    mol = jnp.sum(H, axis=1)                                    # (B, F)
    return mol @ w_nn.T + b_nn                                  # (B, 1)


if __name__ == "__main__":
    B, N, F = 2, 16, ATOM_FDIM   # 2 molecules, 16 atoms each, atom_fdim = 75

    key = jax.random.PRNGKey(0)
    k1, k2, k3, k4, k5, k6 = jax.random.split(key, 6)

    # deterministic synthetic "mol2graph" output
    atoms = jax.random.normal(k1, (B, N, F), dtype=jnp.float32)
    upper = jnp.triu(jax.random.bernoulli(k2, 0.3, (B, N, N)), 1)
    adj = (upper | jnp.swapaxes(upper, -1, -2)).astype(jnp.float32)  # symmetric, no self loops

    # deterministic parameters (PyTorch Linear default init bounds)
    bound_u = 1.0 / math.sqrt(2 * F)
    w_u = jax.random.uniform(k3, (F, 2 * F), jnp.float32, -bound_u, bound_u)
    b_u = jax.random.uniform(k4, (F,), jnp.float32, -bound_u, bound_u)
    bound_nn = 1.0 / math.sqrt(F)
    w_nn = jax.random.uniform(k5, (1, F), jnp.float32, -bound_nn, bound_nn)
    b_nn = jax.random.uniform(k6, (1,), jnp.float32, -bound_nn, bound_nn)

    ref = mpnn_reference(adj, atoms, w_u, b_u, w_nn, b_nn)

    # f32 MXU path: tight parity with the reference
    fwd_f32 = jax.jit(functools.partial(mpnn_forward, mxu_dtype=jnp.float32))
    out_f32 = jax.block_until_ready(fwd_f32(adj, atoms, w_u, b_u, w_nn, b_nn))
    assert out_f32.shape == (B, 1)
    assert jnp.allclose(out_f32, ref, rtol=1e-4, atol=1e-4), (out_f32, ref)

    # bf16 MXU path (default, fast): loose tolerance for bf16 operands (f32 accumulation)
    fwd_bf16 = jax.jit(mpnn_forward)
    out_bf16 = jax.block_until_ready(fwd_bf16(adj, atoms, w_u, b_u, w_nn, b_nn))
    assert out_bf16.shape == (B, 1)
    assert jnp.allclose(out_bf16, ref, rtol=1e-1, atol=1e-1), (out_bf16, ref)

    print("KERNEL_OK")
</pallas_src>

<mosaic_0001>
module attributes {stable_mosaic.version = 11 : i64} {
  func.func @kernel(%arg0: i32, %arg1: memref<2x16x16xbf16, #tpu.memory_space<vmem>>, %arg2: memref<2x16x128xf32, #tpu.memory_space<vmem>>, %arg3: memref<256x128xf32, #tpu.memory_space<vmem>>, %arg4: memref<1x128xf32, #tpu.memory_space<vmem>>, %arg5: memref<2x128xf32, #tpu.memory_space<vmem>>) attributes {dimension_semantics = [#tpu.dimension_semantics<parallel>], iteration_bounds = array<i64: 1>, scalar_prefetch = 0 : i64, scratch_operands = 0 : i64, tpu.core_type = #tpu.core_type<tc>, window_params = [{transform_indices = @transform_0, window_bounds = array<i64: 2, 16, 16>}, {transform_indices = @transform_1, window_bounds = array<i64: 2, 16, 128>}, {pipeline_mode = #tpu.pipeline_mode<synchronous>, transform_indices = @transform_2, window_bounds = array<i64: 256, 128>}, {pipeline_mode = #tpu.pipeline_mode<synchronous>, transform_indices = @transform_3, window_bounds = array<i64: 1, 128>}, {transform_indices = @transform_4, window_bounds = array<i64: 2, 128>}]} {
    %c0 = arith.constant 0 : index
    %c0_0 = arith.constant 0 : index
    %c0_1 = arith.constant 0 : index
    %0 = vector.load %arg1[%c0, %c0_0, %c0_1] : memref<2x16x16xbf16, #tpu.memory_space<vmem>>, vector<2x16x16xbf16>
    %1 = arith.extf %0 : vector<2x16x16xbf16> to vector<2x16x16xf32>
    %c0_2 = arith.constant 0 : index
    %c0_3 = arith.constant 0 : index
    %2 = vector.load %arg3[%c0_2, %c0_3] : memref<256x128xf32, #tpu.memory_space<vmem>>, vector<256x128xf32>
    %c0_4 = arith.constant 0 : index
    %c0_5 = arith.constant 0 : index
    %3 = vector.load %arg4[%c0_4, %c0_5] : memref<1x128xf32, #tpu.memory_space<vmem>>, vector<1x128xf32>
    %c0_6 = arith.constant 0 : index
    %c0_7 = arith.constant 0 : index
    %c0_8 = arith.constant 0 : index
    %4 = vector.load %arg2[%c0_6, %c0_7, %c0_8] : memref<2x16x128xf32, #tpu.memory_space<vmem>>, vector<2x16x128xf32>
    %5 = vector.shape_cast %4 : vector<2x16x128xf32> to vector<32x128xf32>
    %c0_i32 = arith.constant 0 : i32
    %6 = vector.shape_cast %5 : vector<32x128xf32> to vector<2x16x128xf32>
    %cst = arith.constant dense<0.000000e+00> : vector<2x16x128xf32>
    %7 = tpu.matmul %1, %6, %cst {dimension_numbers = #tpu.dot_dimension_numbers<[2], [1], [1], [2], [0, 0, 0, 1, 1, 2], [0], [0]>} : vector<2x16x16xf32>, vector<2x16x128xf32>, vector<2x16x128xf32> -> vector<2x16x128xf32>
    %8 = vector.shape_cast %7 : vector<2x16x128xf32> to vector<32x128xf32>
    %9 = tpu.concatenate %5, %8 in 1 : vector<32x128xf32>, vector<32x128xf32> -> vector<32x256xf32>
    %cst_9 = arith.constant dense<0.000000e+00> : vector<32x128xf32>
    %10 = tpu.matmul %9, %2, %cst_9 {dimension_numbers = #tpu.dot_dimension_numbers<[1], [0], [0], [1], [0, 0, 1, 1], [], []>} : vector<32x256xf32>, vector<256x128xf32>, vector<32x128xf32> -> vector<32x128xf32>
    %11 = vector.broadcast %3 : vector<1x128xf32> to vector<32x128xf32>
    %12 = arith.addf %10, %11 : vector<32x128xf32>
    %cst_10 = arith.constant 0.000000e+00 : f32
    %13 = vector.broadcast %cst_10 : f32 to vector<32x128xf32>
    %14 = arith.maximumf %12, %13 : vector<32x128xf32>
    %c1_i32 = arith.constant 1 : i32
    %15 = vector.shape_cast %14 : vector<32x128xf32> to vector<2x16x128xf32>
    %cst_11 = arith.constant dense<0.000000e+00> : vector<2x16x128xf32>
    %16 = tpu.matmul %1, %15, %cst_11 {dimension_numbers = #tpu.dot_dimension_numbers<[2], [1], [1], [2], [0, 0, 0, 1, 1, 2], [0], [0]>} : vector<2x16x16xf32>, vector<2x16x128xf32>, vector<2x16x128xf32> -> vector<2x16x128xf32>
    %17 = vector.shape_cast %16 : vector<2x16x128xf32> to vector<32x128xf32>
    %18 = tpu.concatenate %14, %17 in 1 : vector<32x128xf32>, vector<32x128xf32> -> vector<32x256xf32>
    %cst_12 = arith.constant dense<0.000000e+00> : vector<32x128xf32>
    %19 = tpu.matmul %18, %2, %cst_12 {dimension_numbers = #tpu.dot_dimension_numbers<[1], [0], [0], [1], [0, 0, 1, 1], [], []>} : vector<32x256xf32>, vector<256x128xf32>, vector<32x128xf32> -> vector<32x128xf32>
    %20 = vector.broadcast %3 : vector<1x128xf32> to vector<32x128xf32>
    %21 = arith.addf %19, %20 : vector<32x128xf32>
    %cst_13 = arith.constant 0.000000e+00 : f32
    %22 = vector.broadcast %cst_13 : f32 to vector<32x128xf32>
    %23 = arith.maximumf %21, %22 : vector<32x128xf32>
    %c2_i32 = arith.constant 2 : i32
    %24 = vector.shape_cast %23 : vector<32x128xf32> to vector<2x16x128xf32>
    %cst_14 = arith.constant dense<0.000000e+00> : vector<2x16x128xf32>
    %25 = tpu.matmul %1, %24, %cst_14 {dimension_numbers = #tpu.dot_dimension_numbers<[2], [1], [1], [2], [0, 0, 0, 1, 1, 2], [0], [0]>} : vector<2x16x16xf32>, vector<2x16x128xf32>, vector<2x16x128xf32> -> vector<2x16x128xf32>
    %26 = vector.shape_cast %25 : vector<2x16x128xf32> to vector<32x128xf32>
    %27 = tpu.concatenate %23, %26 in 1 : vector<32x128xf32>, vector<32x128xf32> -> vector<32x256xf32>
    %cst_15 = arith.constant dense<0.000000e+00> : vector<32x128xf32>
    %28 = tpu.matmul %27, %2, %cst_15 {dimension_numbers = #tpu.dot_dimension_numbers<[1], [0], [0], [1], [0, 0, 1, 1], [], []>} : vector<32x256xf32>, vector<256x128xf32>, vector<32x128xf32> -> vector<32x128xf32>
    %29 = vector.broadcast %3 : vector<1x128xf32> to vector<32x128xf32>
    %30 = arith.addf %28, %29 : vector<32x128xf32>
    %cst_16 = arith.constant 0.000000e+00 : f32
    %31 = vector.broadcast %cst_16 : f32 to vector<32x128xf32>
    %32 = arith.maximumf %30, %31 : vector<32x128xf32>
    %33 = vector.shape_cast %32 : vector<32x128xf32> to vector<2x16x128xf32>
    %cst_17 = arith.constant dense<0.000000e+00> : vector<2x128xf32>
    %34 = vector.multi_reduction <add>, %33, %cst_17 [1] : vector<2x16x128xf32> to vector<2x128xf32>
    %c0_18 = arith.constant 0 : index
    %c0_19 = arith.constant 0 : index
    %35 = vector.load %arg5[%c0_18, %c0_19] : memref<2x128xf32, #tpu.memory_space<vmem>>, vector<2x128xf32>
    tpu.vector_store %arg5[%c0_18, %c0_19], %34 {strides = array<i32>} : memref<2x128xf32, #tpu.memory_space<vmem>>, vector<2x128xf32>,
    return
  }
  func.func @transform_0(%arg0: i32) -> (i32, i32, i32) {
    %c0_i32 = arith.constant 0 : i32
    %c0_i32_0 = arith.constant 0 : i32
    %c0_i32_1 = arith.constant 0 : i32
    return %arg0, %c0_i32, %c0_i32_0 : i32, i32, i32
  }
  func.func @transform_1(%arg0: i32) -> (i32, i32, i32) {
    %c0_i32 = arith.constant 0 : i32
    %c0_i32_0 = arith.constant 0 : i32
    %c0_i32_1 = arith.constant 0 : i32
    return %arg0, %c0_i32, %c0_i32_0 : i32, i32, i32
  }
  func.func @transform_2(%arg0: i32) -> (i32, i32) {
    %c0_i32 = arith.constant 0 : i32
    %c0_i32_0 = arith.constant 0 : i32
    %c0_i32_1 = arith.constant 0 : i32
    return %c0_i32, %c0_i32_0 : i32, i32
  }
  func.func @transform_3(%arg0: i32) -> (i32, i32) {
    %c0_i32 = arith.constant 0 : i32
    %c0_i32_0 = arith.constant 0 : i32
    %c0_i32_1 = arith.constant 0 : i32
    return %c0_i32, %c0_i32_0 : i32, i32
  }
  func.func @transform_4(%arg0: i32) -> (i32, i32) {
    %c0_i32 = arith.constant 0 : i32
    %c0_i32_0 = arith.constant 0 : i32
    return %arg0, %c0_i32 : i32, i32
  }
}

</mosaic_0001>

<llo_original>
// kernel: mpnn_forward.1
$region0: #{mpnn_forward.1}
  #allocation0 [shape = 'u32[]', space=smem, size = 0x4, offset = 0x4, fixed_abs, tag = 'smem constant byte address 0x4 - core index']
  #allocation1 [shape = 'u32[144,128]{1,0:T(1,128)}', space=vmem, size = 0x12000, scoped, tag = 'internal scratch']
  %s0 = inlined_call_operand.vmem [shape: bf16[2,16,16], index: 0, kind: input, shape index: {}]
  %s1 = inlined_call_operand.vmem [shape: f32[2,16,128], index: 1, kind: input, shape index: {}]
  %s2 = inlined_call_operand.vmem [shape: f32[256,128], index: 2, kind: input, shape index: {}]
  %s3 = inlined_call_operand.vmem [shape: f32[1,128], index: 3, kind: input, shape index: {}]
  %s4 = inlined_call_operand.vmem [shape: f32[2,128], index: 4, kind: output, shape index: {}]
  %s5 = sld [smem:[#allocation0]]
  $region26: #{mpnn_forward.1} parent=0
    _
  %s7 = ssub.s32 1, %s5
  %s8 = scalar_select 0, %s7, %s5
  // Predicated region
  $region2: #{mpnn_forward.1} parent=0 // pred_check
    _
  $region3: #{mpnn_forward.1} parent=0 // pred_check_branch
    %10 = sbr.rel (0) target = $region5
  $region4: #{mpnn_forward.1} parent=0 // pred_region
    _
  $region5: #{mpnn_forward.1} parent=0 // pred_fallthru
    _
  // Predicated region
  $region6: #{mpnn_forward.1} parent=0 // pred_check
    _
  $region7: #{mpnn_forward.1} parent=0 // pred_check_branch
    %12 = sbr.rel (0) target = $region9
  $region8: #{mpnn_forward.1} parent=0 // pred_region
    _
  $region9: #{mpnn_forward.1} parent=0 // pred_fallthru
    _
  // Predicated region
  $region10: #{mpnn_forward.1} parent=0 // pred_check
    _
  $region11: #{mpnn_forward.1} parent=0 // pred_check_branch
    %14 = sbr.rel (0) target = $region13
  $region12: #{mpnn_forward.1} parent=0 // pred_region
    _
  $region13: #{mpnn_forward.1} parent=0 // pred_fallthru
    _
  // Predicated region
  $region14: #{mpnn_forward.1} parent=0 // pred_check
    _
  $region15: #{mpnn_forward.1} parent=0 // pred_check_branch
    %16 = sbr.rel (0) target = $region17
  $region16: #{mpnn_forward.1} parent=0 // pred_region
    _
  $region17: #{mpnn_forward.1} parent=0 // pred_fallthru
    _
  %v17 = vld [vmem:[%s0] sm:$0xf]
  %v18 = vld [vmem:[%s0 + $0x4] sm:$0xf]
  %v19 = vld [vmem:[%s0 + $0x8] sm:$0xf]
  %v20 = vld [vmem:[%s0 + $0xc] sm:$0xf]
  %v21 = vunpack.c.l.bf16 %v17
  %v22 = vunpack.c.l.bf16 %v18
  %v23 = vunpack.c.l.bf16 %v19
  %v24 = vunpack.c.l.bf16 %v20
  %v25 = vld [vmem:[%s2] sm:$0xff]
  %v26 = vld [vmem:[%s2 + $0x8] sm:$0xff]
  %v27 = vld [vmem:[%s2 + $0x10] sm:$0xff]
  %v28 = vld [vmem:[%s2 + $0x18] sm:$0xff]
  %v29 = vld [vmem:[%s2 + $0x20] sm:$0xff]
  %v30 = vld [vmem:[%s2 + $0x28] sm:$0xff]
  %v31 = vld [vmem:[%s2 + $0x30] sm:$0xff]
  %v32 = vld [vmem:[%s2 + $0x38] sm:$0xff]
  %v33 = vld [vmem:[%s2 + $0x40] sm:$0xff]
  %v34 = vld [vmem:[%s2 + $0x48] sm:$0xff]
  %v35 = vld [vmem:[%s2 + $0x50] sm:$0xff]
  %v36 = vld [vmem:[%s2 + $0x58] sm:$0xff]
  %v37 = vld [vmem:[%s2 + $0x60] sm:$0xff]
  %v38 = vld [vmem:[%s2 + $0x68] sm:$0xff]
  %v39 = vld [vmem:[%s2 + $0x70] sm:$0xff]
  %v40 = vld [vmem:[%s2 + $0x78] sm:$0xff]
  %v41 = vld [vmem:[%s2 + $0x80] sm:$0xff]
  %v42 = vld [vmem:[%s2 + $0x88] sm:$0xff]
  %v43 = vld [vmem:[%s2 + $0x90] sm:$0xff]
  %v44 = vld [vmem:[%s2 + $0x98] sm:$0xff]
  %v45 = vld [vmem:[%s2 + $0xa0] sm:$0xff]
  %v46 = vld [vmem:[%s2 + $0xa8] sm:$0xff]
  %v47 = vld [vmem:[%s2 + $0xb0] sm:$0xff]
  %v48 = vld [vmem:[%s2 + $0xb8] sm:$0xff]
  %v49 = vld [vmem:[%s2 + $0xc0] sm:$0xff]
  %v50 = vld [vmem:[%s2 + $0xc8] sm:$0xff]
  %v51 = vld [vmem:[%s2 + $0xd0] sm:$0xff]
  %v52 = vld [vmem:[%s2 + $0xd8] sm:$0xff]
  %v53 = vld [vmem:[%s2 + $0xe0] sm:$0xff]
  %v54 = vld [vmem:[%s2 + $0xe8] sm:$0xff]
  %v55 = vld [vmem:[%s2 + $0xf0] sm:$0xff]
  %v56 = vld [vmem:[%s2 + $0xf8] sm:$0xff]
  %v57 = vld [vmem:[%s3] sm:$0x1]
  %v58 = vld [vmem:[%s1] sm:$0xff]
  %v59 = vld [vmem:[%s1 + $0x8] sm:$0xff]
  %v60 = vld [vmem:[%s1 + $0x10] sm:$0xff]
  %v61 = vld [vmem:[%s1 + $0x18] sm:$0xff]
  %vm62 = vcmask 130048
  %v64 = vsel %vm62, %v21, 0
  %v67 = vsel %vm62, %v22, 0
  %69 = vmatprep.subr.mxu0 0.0
  %70 = vmatpush1.msra.mxu0 0.0
  %71 = vmatprep.subr.mxu0 0.0
  %72 = vmatpush1.msra.mxu0 0.0
  %73 = vmatprep.subr.mxu0 0.0
  %74 = vmatpush1.msra.mxu0 0.0
  %75 = vmatprep.subr.mxu0 0.0
  %76 = vmatpush1.msra.mxu0 0.0
  %77 = vmatprep.subr.mxu0 0.0
  %78 = vmatpush1.msra.mxu0 0.0
  %79 = vmatprep.subr.mxu0 0.0
  %80 = vmatpush1.msra.mxu0 0.0
  %81 = vmatprep.subr.mxu0 0.0
  %82 = vmatpush1.msra.mxu0 0.0
  %83 = vmatprep.subr.mxu0 0.0
  %84 = vmatpush1.msra.mxu0 0.0
  %85 = vmatprep.subr.mxu0 0.0
  %86 = vmatpush1.msra.mxu0 0.0
  %87 = vmatprep.subr.mxu0 0.0
  %88 = vmatpush1.msra.mxu0 0.0
  %89 = vmatprep.subr.mxu0 0.0
  %90 = vmatpush1.msra.mxu0 0.0
  %91 = vmatprep.subr.mxu0 0.0
  %92 = vmatpush1.msra.mxu0 0.0
  %93 = vmatprep.subr.mxu0 0.0
  %94 = vmatpush1.msra.mxu0 0.0
  %95 = vmatprep.subr.mxu0 0.0
  %96 = vmatpush1.msra.mxu0 0.0
  %97 = vmatprep.subr.mxu0 0.0
  %98 = vmatpush1.msra.mxu0 %v59
  %99 = vmatprep.subr.mxu0 0.0
  %100 = vmatpush1.msra.mxu0 %v58
  %101 = vmatprep.subr.mxu0 0.0
  %102 = vmatpush2.msra.mxu0 0.0
  %103 = vmatprep.subr.mxu0 0.0
  %104 = vmatpush2.msra.mxu0 0.0
  %105 = vmatprep.subr.mxu0 0.0
  %106 = vmatpush2.msra.mxu0 0.0
  %107 = vmatprep.subr.mxu0 0.0
  %108 = vmatpush2.msra.mxu0 0.0
  %109 = vmatprep.subr.mxu0 0.0
  %110 = vmatpush2.msra.mxu0 0.0
  %111 = vmatprep.subr.mxu0 0.0
  %112 = vmatpush2.msra.mxu0 0.0
  %113 = vmatprep.subr.mxu0 0.0
  %114 = vmatpush2.msra.mxu0 0.0
  %115 = vmatprep.subr.mxu0 0.0
  %116 = vmatpush2.msra.mxu0 0.0
  %117 = vmatprep.subr.mxu0 0.0
  %118 = vmatpush2.msra.mxu0 0.0
  %119 = vmatprep.subr.mxu0 0.0
  %120 = vmatpush2.msra.mxu0 0.0
  %121 = vmatprep.subr.mxu0 0.0
  %122 = vmatpush2.msra.mxu0 0.0
  %123 = vmatprep.subr.mxu0 0.0
  %124 = vmatpush2.msra.mxu0 0.0
  %125 = vmatprep.subr.mxu0 0.0
  %126 = vmatpush2.msra.mxu0 0.0
  %127 = vmatprep.subr.mxu0 0.0
  %128 = vmatpush2.msra.mxu0 0.0
  %129 = vmatprep.subr.mxu0 0.0
  %130 = vmatpush2.msra.mxu0 0.0
  %131 = vmatprep.subr.mxu0 0.0
  %132 = vmatpush2.msra.mxu0 0.0
  %133 = vmatprep.mubr.f32.mxu0 0.0
  %134 = vmatmul.mubr.f32.gmra.mxu0 %v64
  %v135 = vpop.f32.mrf.mxu0
  %v136 = vadd.f32 0.0, %v135
  %v137 = vpop.f32.mrf.mxu0
  %138 = vmatprep.mubr.f32.mxu0 0.0
  %139 = vmatmul.mubr.f32.gmra.mxu0 %v67
  %v140 = vpop.f32.mrf.mxu0
  %v141 = vadd.f32 0.0, %v140
  %v142 = vpop.f32.mrf.mxu0
  %143 = vdwg.mxu0
  %v145 = vsel %vm62, %v23, 0
  %v148 = vsel %vm62, %v24, 0
  %150 = vmatprep.subr.mxu0 0.0
  %151 = vmatpush1.msra.mxu0 0.0
  %152 = vmatprep.subr.mxu0 0.0
  %153 = vmatpush1.msra.mxu0 0.0
  %154 = vmatprep.subr.mxu0 0.0
  %155 = vmatpush1.msra.mxu0 0.0
  %156 = vmatprep.subr.mxu0 0.0
  %157 = vmatpush1.msra.mxu0 0.0
  %158 = vmatprep.subr.mxu0 0.0
  %159 = vmatpush1.msra.mxu0 0.0
  %160 = vmatprep.subr.mxu0 0.0
  %161 = vmatpush1.msra.mxu0 0.0
  %162 = vmatprep.subr.mxu0 0.0
  %163 = vmatpush1.msra.mxu0 0.0
  %164 = vmatprep.subr.mxu0 0.0
  %165 = vmatpush1.msra.mxu0 0.0
  %166 = vmatprep.subr.mxu0 0.0
  %167 = vmatpush1.msra.mxu0 0.0
  %168 = vmatprep.subr.mxu0 0.0
  %169 = vmatpush1.msra.mxu0 0.0
  %170 = vmatprep.subr.mxu0 0.0
  %171 = vmatpush1.msra.mxu0 0.0
  %172 = vmatprep.subr.mxu0 0.0
  %173 = vmatpush1.msra.mxu0 0.0
  %174 = vmatprep.subr.mxu0 0.0
  %175 = vmatpush1.msra.mxu0 0.0
  %176 = vmatprep.subr.mxu0 0.0
  %177 = vmatpush1.msra.mxu0 0.0
  %178 = vmatprep.subr.mxu0 0.0
  %179 = vmatpush1.msra.mxu0 %v61
  %180 = vmatprep.subr.mxu0 0.0
  %181 = vmatpush1.msra.mxu0 %v60
  %182 = vmatprep.subr.mxu0 0.0
  %183 = vmatpush2.msra.mxu0 0.0
  %184 = vmatprep.subr.mxu0 0.0
  %185 = vmatpush2.msra.mxu0 0.0
  %186 = vmatprep.subr.mxu0 0.0
  %187 = vmatpush2.msra.mxu0 0.0
  %188 = vmatprep.subr.mxu0 0.0
  %189 = vmatpush2.msra.mxu0 0.0
  %190 = vmatprep.subr.mxu0 0.0
  %191 = vmatpush2.msra.mxu0 0.0
  %192 = vmatprep.subr.mxu0 0.0
  %193 = vmatpush2.msra.mxu0 0.0
  %194 = vmatprep.subr.mxu0 0.0
  %195 = vmatpush2.msra.mxu0 0.0
  %196 = vmatprep.subr.mxu0 0.0
  %197 = vmatpush2.msra.mxu0 0.0
  %198 = vmatprep.subr.mxu0 0.0
  %199 = vmatpush2.msra.mxu0 0.0
  %200 = vmatprep.subr.mxu0 0.0
  %201 = vmatpush2.msra.mxu0 0.0
  %202 = vmatprep.subr.mxu0 0.0
  %203 = vmatpush2.msra.mxu0 0.0
  %204 = vmatprep.subr.mxu0 0.0
  %205 = vmatpush2.msra.mxu0 0.0
  %206 = vmatprep.subr.mxu0 0.0
  %207 = vmatpush2.msra.mxu0 0.0
  %208 = vmatprep.subr.mxu0 0.0
  %209 = vmatpush2.msra.mxu0 0.0
  %210 = vmatprep.subr.mxu0 0.0
  %211 = vmatpush2.msra.mxu0 0.0
  %212 = vmatprep.subr.mxu0 0.0
  %213 = vmatpush2.msra.mxu0 0.0
  %214 = vmatprep.mubr.f32.mxu0 0.0
  %215 = vmatmul.mubr.f32.gmra.mxu0 %v145
  %v216 = vpop.f32.mrf.mxu0
  %v217 = vadd.f32 0.0, %v216
  %v218 = vpop.f32.mrf.mxu0
  %219 = vmatprep.mubr.f32.mxu0 0.0
  %220 = vmatmul.mubr.f32.gmra.mxu0 %v148
  %v221 = vpop.f32.mrf.mxu0
  %v222 = vadd.f32 0.0, %v221
  %v223 = vpop.f32.mrf.mxu0
  %224 = vdwg.mxu0
  %v226 = vlaneseq
  %v227 = vshrl.u32 %v226, 7
  %v228 = vsub.s32 0, %v227
  %v229 = vrot.slane %v57, %v228
  %231 = vmatprep.subr.mxu0 0.0
  %232 = vmatpush1.msra.mxu0 %v40
  %233 = vmatprep.subr.mxu0 0.0
  %234 = vmatpush1.msra.mxu0 %v39
  %235 = vmatprep.subr.mxu0 0.0
  %236 = vmatpush1.msra.mxu0 %v38
  %237 = vmatprep.subr.mxu0 0.0
  %238 = vmatpush1.msra.mxu0 %v37
  %239 = vmatprep.subr.mxu0 0.0
  %240 = vmatpush1.msra.mxu0 %v36
  %241 = vmatprep.subr.mxu0 0.0
  %242 = vmatpush1.msra.mxu0 %v35
  %243 = vmatprep.subr.mxu0 0.0
  %244 = vmatpush1.msra.mxu0 %v34
  %245 = vmatprep.subr.mxu0 0.0
  %246 = vmatpush1.msra.mxu0 %v33
  %247 = vmatprep.subr.mxu0 0.0
  %248 = vmatpush1.msra.mxu0 %v32
  %249 = vmatprep.subr.mxu0 0.0
  %250 = vmatpush1.msra.mxu0 %v31
  %251 = vmatprep.subr.mxu0 0.0
  %252 = vmatpush1.msra.mxu0 %v30
  %253 = vmatprep.subr.mxu0 0.0
  %254 = vmatpush1.msra.mxu0 %v29
  %255 = vmatprep.subr.mxu0 0.0
  %256 = vmatpush1.msra.mxu0 %v28
  %257 = vmatprep.subr.mxu0 0.0
  %258 = vmatpush1.msra.mxu0 %v27
  %259 = vmatprep.subr.mxu0 0.0
  %260 = vmatpush1.msra.mxu0 %v26
  %261 = vmatprep.subr.mxu0 0.0
  %262 = vmatpush1.msra.mxu0 %v25
  %263 = vmatprep.subr.mxu0 0.0
  %264 = vmatpush2.msra.mxu0 %v56
  %265 = vmatprep.subr.mxu0 0.0
  %266 = vmatpush2.msra.mxu0 %v55
  %267 = vmatprep.subr.mxu0 0.0
  %268 = vmatpush2.msra.mxu0 %v54
  %269 = vmatprep.subr.mxu0 0.0
  %270 = vmatpush2.msra.mxu0 %v53
  %271 = vmatprep.subr.mxu0 0.0
  %272 = vmatpush2.msra.mxu0 %v52
  %273 = vmatprep.subr.mxu0 0.0
  %274 = vmatpush2.msra.mxu0 %v51
  %275 = vmatprep.subr.mxu0 0.0
  %276 = vmatpush2.msra.mxu0 %v50
  %277 = vmatprep.subr.mxu0 0.0
  %278 = vmatpush2.msra.mxu0 %v49
  %279 = vmatprep.subr.mxu0 0.0
  %280 = vmatpush2.msra.mxu0 %v48
  %281 = vmatprep.subr.mxu0 0.0
  %282 = vmatpush2.msra.mxu0 %v47
  %283 = vmatprep.subr.mxu0 0.0
  %284 = vmatpush2.msra.mxu0 %v46
  %285 = vmatprep.subr.mxu0 0.0
  %286 = vmatpush2.msra.mxu0 %v45
  %287 = vmatprep.subr.mxu0 0.0
  %288 = vmatpush2.msra.mxu0 %v44
  %289 = vmatprep.subr.mxu0 0.0
  %290 = vmatpush2.msra.mxu0 %v43
  %291 = vmatprep.subr.mxu0 0.0
  %292 = vmatpush2.msra.mxu0 %v42
  %293 = vmatprep.subr.mxu0 0.0
  %294 = vmatpush2.msra.mxu0 %v41
  %295 = vmatprep.mubr.f32.mxu0 %v136
  %296 = vmatmul.mubr.f32.gmra.mxu0 %v58
  %v297 = vpop.f32.mrf.mxu0
  %v298 = vadd.f32 %v229, %v297
  %v299 = vpop.f32.mrf.mxu0
  %300 = vmatprep.mubr.f32.mxu0 %v141
  %301 = vmatmul.mubr.f32.gmra.mxu0 %v59
  %v302 = vpop.f32.mrf.mxu0
  %v303 = vadd.f32 %v229, %v302
  %v304 = vpop.f32.mrf.mxu0
  %305 = vmatprep.mubr.f32.mxu0 %v217
  %306 = vmatmul.mubr.f32.gmra.mxu0 %v60
  %v307 = vpop.f32.mrf.mxu0
  %v308 = vadd.f32 %v229, %v307
  %v309 = vpop.f32.mrf.mxu0
  %310 = vmatprep.mubr.f32.mxu0 %v222
  %311 = vmatmul.mubr.f32.gmra.mxu0 %v61
  %v312 = vpop.f32.mrf.mxu0
  %v313 = vadd.f32 %v229, %v312
  %v314 = vpop.f32.mrf.mxu0
  %315 = vdwg.mxu0
  %v316 = vmax.f32 %v298, 0.0
  %v317 = vmax.f32 %v303, 0.0
  %v318 = vmax.f32 %v308, 0.0
  %v319 = vmax.f32 %v313, 0.0
  %320 = vmatprep.subr.mxu0 0.0
  %321 = vmatpush1.msra.mxu0 0.0
  %322 = vmatprep.subr.mxu0 0.0
  %323 = vmatpush1.msra.mxu0 0.0
  %324 = vmatprep.subr.mxu0 0.0
  %325 = vmatpush1.msra.mxu0 0.0
  %326 = vmatprep.subr.mxu0 0.0
  %327 = vmatpush1.msra.mxu0 0.0
  %328 = vmatprep.subr.mxu0 0.0
  %329 = vmatpush1.msra.mxu0 0.0
  %330 = vmatprep.subr.mxu0 0.0
  %331 = vmatpush1.msra.mxu0 0.0
  %332 = vmatprep.subr.mxu0 0.0
  %333 = vmatpush1.msra.mxu0 0.0
  %334 = vmatprep.subr.mxu0 0.0
  %335 = vmatpush1.msra.mxu0 0.0
  %336 = vmatprep.subr.mxu0 0.0
  %337 = vmatpush1.msra.mxu0 0.0
  %338 = vmatprep.subr.mxu0 0.0
  %339 = vmatpush1.msra.mxu0 0.0
  %340 = vmatprep.subr.mxu0 0.0
  %341 = vmatpush1.msra.mxu0 0.0
  %342 = vmatprep.subr.mxu0 0.0
  %343 = vmatpush1.msra.mxu0 0.0
  %344 = vmatprep.subr.mxu0 0.0
  %345 = vmatpush1.msra.mxu0 0.0
  %346 = vmatprep.subr.mxu0 0.0
  %347 = vmatpush1.msra.mxu0 0.0
  %348 = vmatprep.subr.mxu0 0.0
  %349 = vmatpush1.msra.mxu0 %v317
  %350 = vmatprep.subr.mxu0 0.0
  %351 = vmatpush1.msra.mxu0 %v316
  %352 = vmatprep.subr.mxu0 0.0
  %353 = vmatpush2.msra.mxu0 0.0
  %354 = vmatprep.subr.mxu0 0.0
  %355 = vmatpush2.msra.mxu0 0.0
  %356 = vmatprep.subr.mxu0 0.0
  %357 = vmatpush2.msra.mxu0 0.0
  %358 = vmatprep.subr.mxu0 0.0
  %359 = vmatpush2.msra.mxu0 0.0
  %360 = vmatprep.subr.mxu0 0.0
  %361 = vmatpush2.msra.mxu0 0.0
  %362 = vmatprep.subr.mxu0 0.0
  %363 = vmatpush2.msra.mxu0 0.0
  %364 = vmatprep.subr.mxu0 0.0
  %365 = vmatpush2.msra.mxu0 0.0
  %366 = vmatprep.subr.mxu0 0.0
  %367 = vmatpush2.msra.mxu0 0.0
  %368 = vmatprep.subr.mxu0 0.0
  %369 = vmatpush2.msra.mxu0 0.0
  %370 = vmatprep.subr.mxu0 0.0
  %371 = vmatpush2.msra.mxu0 0.0
  %372 = vmatprep.subr.mxu0 0.0
  %373 = vmatpush2.msra.mxu0 0.0
  %374 = vmatprep.subr.mxu0 0.0
  %375 = vmatpush2.msra.mxu0 0.0
  %376 = vmatprep.subr.mxu0 0.0
  %377 = vmatpush2.msra.mxu0 0.0
  %378 = vmatprep.subr.mxu0 0.0
  %379 = vmatpush2.msra.mxu0 0.0
  %380 = vmatprep.subr.mxu0 0.0
  %381 = vmatpush2.msra.mxu0 0.0
  %382 = vmatprep.subr.mxu0 0.0
  %383 = vmatpush2.msra.mxu0 0.0
  %384 = vmatprep.mubr.f32.mxu0 0.0
  %385 = vmatmul.mubr.f32.gmra.mxu0 %v64
  %v386 = vpop.f32.mrf.mxu0
  %v387 = vadd.f32 0.0, %v386
  %v388 = vpop.f32.mrf.mxu0
  %389 = vmatprep.mubr.f32.mxu0 0.0
  %390 = vmatmul.mubr.f32.gmra.mxu0 %v67
  %v391 = vpop.f32.mrf.mxu0
  %v392 = vadd.f32 0.0, %v391
  %v393 = vpop.f32.mrf.mxu0
  %394 = vdwg.mxu0
  %395 = vmatprep.subr.mxu0 0.0
  %396 = vmatpush1.msra.mxu0 0.0
  %397 = vmatprep.subr.mxu0 0.0
  %398 = vmatpush1.msra.mxu0 0.0
  %399 = vmatprep.subr.mxu0 0.0
  %400 = vmatpush1.msra.mxu0 0.0
  %401 = vmatprep.subr.mxu0 0.0
  %402 = vmatpush1.msra.mxu0 0.0
  %403 = vmatprep.subr.mxu0 0.0
  %404 = vmatpush1.msra.mxu0 0.0
  %405 = vmatprep.subr.mxu0 0.0
  %406 = vmatpush1.msra.mxu0 0.0
  %407 = vmatprep.subr.mxu0 0.0
  %408 = vmatpush1.msra.mxu0 0.0
  %409 = vmatprep.subr.mxu0 0.0
  %410 = vmatpush1.msra.mxu0 0.0
  %411 = vmatprep.subr.mxu0 0.0
  %412 = vmatpush1.msra.mxu0 0.0
  %413 = vmatprep.subr.mxu0 0.0
  %414 = vmatpush1.msra.mxu0 0.0
  %415 = vmatprep.subr.mxu0 0.0
  %416 = vmatpush1.msra.mxu0 0.0
  %417 = vmatprep.subr.mxu0 0.0
  %418 = vmatpush1.msra.mxu0 0.0
  %419 = vmatprep.subr.mxu0 0.0
  %420 = vmatpush1.msra.mxu0 0.0
  %421 = vmatprep.subr.mxu0 0.0
  %422 = vmatpush1.msra.mxu0 0.0
  %423 = vmatprep.subr.mxu0 0.0
  %424 = vmatpush1.msra.mxu0 %v319
  %425 = vmatprep.subr.mxu0 0.0
  %426 = vmatpush1.msra.mxu0 %v318
  %427 = vmatprep.subr.mxu0 0.0
  %428 = vmatpush2.msra.mxu0 0.0
  %429 = vmatprep.subr.mxu0 0.0
  %430 = vmatpush2.msra.mxu0 0.0
  %431 = vmatprep.subr.mxu0 0.0
  %432 = vmatpush2.msra.mxu0 0.0
  %433 = vmatprep.subr.mxu0 0.0
  %434 = vmatpush2.msra.mxu0 0.0
  %435 = vmatprep.subr.mxu0 0.0
  %436 = vmatpush2.msra.mxu0 0.0
  %437 = vmatprep.subr.mxu0 0.0
  %438 = vmatpush2.msra.mxu0 0.0
  %439 = vmatprep.subr.mxu0 0.0
  %440 = vmatpush2.msra.mxu0 0.0
  %441 = vmatprep.subr.mxu0 0.0
  %442 = vmatpush2.msra.mxu0 0.0
  %443 = vmatprep.subr.mxu0 0.0
  %444 = vmatpush2.msra.mxu0 0.0
  %445 = vmatprep.subr.mxu0 0.0
  %446 = vmatpush2.msra.mxu0 0.0
  %447 = vmatprep.subr.mxu0 0.0
  %448 = vmatpush2.msra.mxu0 0.0
  %449 = vmatprep.subr.mxu0 0.0
  %450 = vmatpush2.msra.mxu0 0.0
  %451 = vmatprep.subr.mxu0 0.0
  %452 = vmatpush2.msra.mxu0 0.0
  %453 = vmatprep.subr.mxu0 0.0
  %454 = vmatpush2.msra.mxu0 0.0
  %455 = vmatprep.subr.mxu0 0.0
  %456 = vmatpush2.msra.mxu0 0.0
  %457 = vmatprep.subr.mxu0 0.0
  %458 = vmatpush2.msra.mxu0 0.0
  %459 = vmatprep.mubr.f32.mxu0 0.0
  %460 = vmatmul.mubr.f32.gmra.mxu0 %v145
  %v461 = vpop.f32.mrf.mxu0
  %v462 = vadd.f32 0.0, %v461
  %v463 = vpop.f32.mrf.mxu0
  %464 = vmatprep.mubr.f32.mxu0 0.0
  %465 = vmatmul.mubr.f32.gmra.mxu0 %v148
  %v466 = vpop.f32.mrf.mxu0
  %v467 = vadd.f32 0.0, %v466
  %v468 = vpop.f32.mrf.mxu0
  %469 = vdwg.mxu0
  %470 = vmatprep.subr.mxu0 0.0
  %471 = vmatpush1.msra.mxu0 %v40
  %472 = vmatprep.subr.mxu0 0.0
  %473 = vmatpush1.msra.mxu0 %v39
  %474 = vmatprep.subr.mxu0 0.0
  %475 = vmatpush1.msra.mxu0 %v38
  %476 = vmatprep.subr.mxu0 0.0
  %477 = vmatpush1.msra.mxu0 %v37
  %478 = vmatprep.subr.mxu0 0.0
  %479 = vmatpush1.msra.mxu0 %v36
  %480 = vmatprep.subr.mxu0 0.0
  %481 = vmatpush1.msra.mxu0 %v35
  %482 = vmatprep.subr.mxu0 0.0
  %483 = vmatpush1.msra.mxu0 %v34
  %484 = vmatprep.subr.mxu0 0.0
  %485 = vmatpush1.msra.mxu0 %v33
  %486 = vmatprep.subr.mxu0 0.0
  %487 = vmatpush1.msra.mxu0 %v32
  %488 = vmatprep.subr.mxu0 0.0
  %489 = vmatpush1.msra.mxu0 %v31
  %490 = vmatprep.subr.mxu0 0.0
  %491 = vmatpush1.msra.mxu0 %v30
  %492 = vmatprep.subr.mxu0 0.0
  %493 = vmatpush1.msra.mxu0 %v29
  %494 = vmatprep.subr.mxu0 0.0
  %495 = vmatpush1.msra.mxu0 %v28
  %496 = vmatprep.subr.mxu0 0.0
  %497 = vmatpush1.msra.mxu0 %v27
  %498 = vmatprep.subr.mxu0 0.0
  %499 = vmatpush1.msra.mxu0 %v26
  %500 = vmatprep.subr.mxu0 0.0
  %501 = vmatpush1.msra.mxu0 %v25
  %502 = vmatprep.subr.mxu0 0.0
  %503 = vmatpush2.msra.mxu0 %v56
  %504 = vmatprep.subr.mxu0 0.0
  %505 = vmatpush2.msra.mxu0 %v55
  %506 = vmatprep.subr.mxu0 0.0
  %507 = vmatpush2.msra.mxu0 %v54
  %508 = vmatprep.subr.mxu0 0.0
  %509 = vmatpush2.msra.mxu0 %v53
  %510 = vmatprep.subr.mxu0 0.0
  %511 = vmatpush2.msra.mxu0 %v52
  %512 = vmatprep.subr.mxu0 0.0
  %513 = vmatpush2.msra.mxu0 %v51
  %514 = vmatprep.subr.mxu0 0.0
  %515 = vmatpush2.msra.mxu0 %v50
  %516 = vmatprep.subr.mxu0 0.0
  %517 = vmatpush2.msra.mxu0 %v49
  %518 = vmatprep.subr.mxu0 0.0
  %519 = vmatpush2.msra.mxu0 %v48
  %520 = vmatprep.subr.mxu0 0.0
  %521 = vmatpush2.msra.mxu0 %v47
  %522 = vmatprep.subr.mxu0 0.0
  %523 = vmatpush2.msra.mxu0 %v46
  %524 = vmatprep.subr.mxu0 0.0
  %525 = vmatpush2.msra.mxu0 %v45
  %526 = vmatprep.subr.mxu0 0.0
  %527 = vmatpush2.msra.mxu0 %v44
  %528 = vmatprep.subr.mxu0 0.0
  %529 = vmatpush2.msra.mxu0 %v43
  %530 = vmatprep.subr.mxu0 0.0
  %531 = vmatpush2.msra.mxu0 %v42
  %532 = vmatprep.subr.mxu0 0.0
  %533 = vmatpush2.msra.mxu0 %v41
  %534 = vmatprep.mubr.f32.mxu0 %v387
  %535 = vmatmul.mubr.f32.gmra.mxu0 %v316
  %v536 = vpop.f32.mrf.mxu0
  %v537 = vadd.f32 %v229, %v536
  %v538 = vpop.f32.mrf.mxu0
  %539 = vmatprep.mubr.f32.mxu0 %v392
  %540 = vmatmul.mubr.f32.gmra.mxu0 %v317
  %v541 = vpop.f32.mrf.mxu0
  %v542 = vadd.f32 %v229, %v541
  %v543 = vpop.f32.mrf.mxu0
  %544 = vmatprep.mubr.f32.mxu0 %v462
  %545 = vmatmul.mubr.f32.gmra.mxu0 %v318
  %v546 = vpop.f32.mrf.mxu0
  %v547 = vadd.f32 %v229, %v546
  %v548 = vpop.f32.mrf.mxu0
  %549 = vmatprep.mubr.f32.mxu0 %v467
  %550 = vmatmul.mubr.f32.gmra.mxu0 %v319
  %v551 = vpop.f32.mrf.mxu0
  %v552 = vadd.f32 %v229, %v551
  %v553 = vpop.f32.mrf.mxu0
  %554 = vdwg.mxu0
  %v555 = vmax.f32 %v537, 0.0
  %v556 = vmax.f32 %v542, 0.0
  %v557 = vmax.f32 %v547, 0.0
  %v558 = vmax.f32 %v552, 0.0
  %559 = vmatprep.subr.mxu0 0.0
  %560 = vmatpush1.msra.mxu0 0.0
  %561 = vmatprep.subr.mxu0 0.0
  %562 = vmatpush1.msra.mxu0 0.0
  %563 = vmatprep.subr.mxu0 0.0
  %564 = vmatpush1.msra.mxu0 0.0
  %565 = vmatprep.subr.mxu0 0.0
  %566 = vmatpush1.msra.mxu0 0.0
  %567 = vmatprep.subr.mxu0 0.0
  %568 = vmatpush1.msra.mxu0 0.0
  %569 = vmatprep.subr.mxu0 0.0
  %570 = vmatpush1.msra.mxu0 0.0
  %571 = vmatprep.subr.mxu0 0.0
  %572 = vmatpush1.msra.mxu0 0.0
  %573 = vmatprep.subr.mxu0 0.0
  %574 = vmatpush1.msra.mxu0 0.0
  %575 = vmatprep.subr.mxu0 0.0
  %576 = vmatpush1.msra.mxu0 0.0
  %577 = vmatprep.subr.mxu0 0.0
  %578 = vmatpush1.msra.mxu0 0.0
  %579 = vmatprep.subr.mxu0 0.0
  %580 = vmatpush1.msra.mxu0 0.0
  %581 = vmatprep.subr.mxu0 0.0
  %582 = vmatpush1.msra.mxu0 0.0
  %583 = vmatprep.subr.mxu0 0.0
  %584 = vmatpush1.msra.mxu0 0.0
  %585 = vmatprep.subr.mxu0 0.0
  %586 = vmatpush1.msra.mxu0 0.0
  %587 = vmatprep.subr.mxu0 0.0
  %588 = vmatpush1.msra.mxu0 %v556
  %589 = vmatprep.subr.mxu0 0.0
  %590 = vmatpush1.msra.mxu0 %v555
  %591 = vmatprep.subr.mxu0 0.0
  %592 = vmatpush2.msra.mxu0 0.0
  %593 = vmatprep.subr.mxu0 0.0
  %594 = vmatpush2.msra.mxu0 0.0
  %595 = vmatprep.subr.mxu0 0.0
  %596 = vmatpush2.msra.mxu0 0.0
  %597 = vmatprep.subr.mxu0 0.0
  %598 = vmatpush2.msra.mxu0 0.0
  %599 = vmatprep.subr.mxu0 0.0
  %600 = vmatpush2.msra.mxu0 0.0
  %601 = vmatprep.subr.mxu0 0.0
  %602 = vmatpush2.msra.mxu0 0.0
  %603 = vmatprep.subr.mxu0 0.0
  %604 = vmatpush2.msra.mxu0 0.0
  %605 = vmatprep.subr.mxu0 0.0
  %606 = vmatpush2.msra.mxu0 0.0
  %607 = vmatprep.subr.mxu0 0.0
  %608 = vmatpush2.msra.mxu0 0.0
  %609 = vmatprep.subr.mxu0 0.0
  %610 = vmatpush2.msra.mxu0 0.0
  %611 = vmatprep.subr.mxu0 0.0
  %612 = vmatpush2.msra.mxu0 0.0
  %613 = vmatprep.subr.mxu0 0.0
  %614 = vmatpush2.msra.mxu0 0.0
  %615 = vmatprep.subr.mxu0 0.0
  %616 = vmatpush2.msra.mxu0 0.0
  %617 = vmatprep.subr.mxu0 0.0
  %618 = vmatpush2.msra.mxu0 0.0
  %619 = vmatprep.subr.mxu0 0.0
  %620 = vmatpush2.msra.mxu0 0.0
  %621 = vmatprep.subr.mxu0 0.0
  %622 = vmatpush2.msra.mxu0 0.0
  %623 = vmatprep.mubr.f32.mxu0 0.0
  %624 = vmatmul.mubr.f32.gmra.mxu0 %v64
  %v625 = vpop.f32.mrf.mxu0
  %v626 = vadd.f32 0.0, %v625
  %v627 = vpop.f32.mrf.mxu0
  %628 = vmatprep.mubr.f32.mxu0 0.0
  %629 = vmatmul.mubr.f32.gmra.mxu0 %v67
  %v630 = vpop.f32.mrf.mxu0
  %v631 = vadd.f32 0.0, %v630
  %v632 = vpop.f32.mrf.mxu0
  %633 = vdwg.mxu0
  %634 = vmatprep.subr.mxu0 0.0
  %635 = vmatpush1.msra.mxu0 0.0
  %636 = vmatprep.subr.mxu0 0.0
  %637 = vmatpush1.msra.mxu0 0.0
  %638 = vmatprep.subr.mxu0 0.0
  %639 = vmatpush1.msra.mxu0 0.0
  %640 = vmatprep.subr.mxu0 0.0
  %641 = vmatpush1.msra.mxu0 0.0
  %642 = vmatprep.subr.mxu0 0.0
  %643 = vmatpush1.msra.mxu0 0.0
  %644 = vmatprep.subr.mxu0 0.0
  %645 = vmatpush1.msra.mxu0 0.0
  %646 = vmatprep.subr.mxu0 0.0
  %647 = vmatpush1.msra.mxu0 0.0
  %648 = vmatprep.subr.mxu0 0.0
  %649 = vmatpush1.msra.mxu0 0.0
  %650 = vmatprep.subr.mxu0 0.0
  %651 = vmatpush1.msra.mxu0 0.0
  %652 = vmatprep.subr.mxu0 0.0
  %653 = vmatpush1.msra.mxu0 0.0
  %654 = vmatprep.subr.mxu0 0.0
  %655 = vmatpush1.msra.mxu0 0.0
  %656 = vmatprep.subr.mxu0 0.0
  %657 = vmatpush1.msra.mxu0 0.0
  %658 = vmatprep.subr.mxu0 0.0
  %659 = vmatpush1.msra.mxu0 0.0
  %660 = vmatprep.subr.mxu0 0.0
  %661 = vmatpush1.msra.mxu0 0.0
  %662 = vmatprep.subr.mxu0 0.0
  %663 = vmatpush1.msra.mxu0 %v558
  %664 = vmatprep.subr.mxu0 0.0
  %665 = vmatpush1.msra.mxu0 %v557
  %666 = vmatprep.subr.mxu0 0.0
  %667 = vmatpush2.msra.mxu0 0.0
  %668 = vmatprep.subr.mxu0 0.0
  %669 = vmatpush2.msra.mxu0 0.0
  %670 = vmatprep.subr.mxu0 0.0
  %671 = vmatpush2.msra.mxu0 0.0
  %672 = vmatprep.subr.mxu0 0.0
  %673 = vmatpush2.msra.mxu0 0.0
  %674 = vmatprep.subr.mxu0 0.0
  %675 = vmatpush2.msra.mxu0 0.0
  %676 = vmatprep.subr.mxu0 0.0
  %677 = vmatpush2.msra.mxu0 0.0
  %678 = vmatprep.subr.mxu0 0.0
  %679 = vmatpush2.msra.mxu0 0.0
  %680 = vmatprep.subr.mxu0 0.0
  %681 = vmatpush2.msra.mxu0 0.0
  %682 = vmatprep.subr.mxu0 0.0
  %683 = vmatpush2.msra.mxu0 0.0
  %684 = vmatprep.subr.mxu0 0.0
  %685 = vmatpush2.msra.mxu0 0.0
  %686 = vmatprep.subr.mxu0 0.0
  %687 = vmatpush2.msra.mxu0 0.0
  %688 = vmatprep.subr.mxu0 0.0
  %689 = vmatpush2.msra.mxu0 0.0
  %690 = vmatprep.subr.mxu0 0.0
  %691 = vmatpush2.msra.mxu0 0.0
  %692 = vmatprep.subr.mxu0 0.0
  %693 = vmatpush2.msra.mxu0 0.0
  %694 = vmatprep.subr.mxu0 0.0
  %695 = vmatpush2.msra.mxu0 0.0
  %696 = vmatprep.subr.mxu0 0.0
  %697 = vmatpush2.msra.mxu0 0.0
  %698 = vmatprep.mubr.f32.mxu0 0.0
  %699 = vmatmul.mubr.f32.gmra.mxu0 %v145
  %v700 = vpop.f32.mrf.mxu0
  %v701 = vadd.f32 0.0, %v700
  %v702 = vpop.f32.mrf.mxu0
  %703 = vmatprep.mubr.f32.mxu0 0.0
  %704 = vmatmul.mubr.f32.gmra.mxu0 %v148
  %v705 = vpop.f32.mrf.mxu0
  %v706 = vadd.f32 0.0, %v705
  %v707 = vpop.f32.mrf.mxu0
  %708 = vdwg.mxu0
  %709 = vmatprep.subr.mxu0 0.0
  %710 = vmatpush1.msra.mxu0 %v40
  %711 = vmatprep.subr.mxu0 0.0
  %712 = vmatpush1.msra.mxu0 %v39
  %713 = vmatprep.subr.mxu0 0.0
  %714 = vmatpush1.msra.mxu0 %v38
  %715 = vmatprep.subr.mxu0 0.0
  %716 = vmatpush1.msra.mxu0 %v37
  %717 = vmatprep.subr.mxu0 0.0
  %718 = vmatpush1.msra.mxu0 %v36
  %719 = vmatprep.subr.mxu0 0.0
  %720 = vmatpush1.msra.mxu0 %v35
  %721 = vmatprep.subr.mxu0 0.0
  %722 = vmatpush1.msra.mxu0 %v34
  %723 = vmatprep.subr.mxu0 0.0
  %724 = vmatpush1.msra.mxu0 %v33
  %725 = vmatprep.subr.mxu0 0.0
  %726 = vmatpush1.msra.mxu0 %v32
  %727 = vmatprep.subr.mxu0 0.0
  %728 = vmatpush1.msra.mxu0 %v31
  %729 = vmatprep.subr.mxu0 0.0
  %730 = vmatpush1.msra.mxu0 %v30
  %731 = vmatprep.subr.mxu0 0.0
  %732 = vmatpush1.msra.mxu0 %v29
  %733 = vmatprep.subr.mxu0 0.0
  %734 = vmatpush1.msra.mxu0 %v28
  %735 = vmatprep.subr.mxu0 0.0
  %736 = vmatpush1.msra.mxu0 %v27
  %737 = vmatprep.subr.mxu0 0.0
  %738 = vmatpush1.msra.mxu0 %v26
  %739 = vmatprep.subr.mxu0 0.0
  %740 = vmatpush1.msra.mxu0 %v25
  %741 = vmatprep.subr.mxu0 0.0
  %742 = vmatpush2.msra.mxu0 %v56
  %743 = vmatprep.subr.mxu0 0.0
  %744 = vmatpush2.msra.mxu0 %v55
  %745 = vmatprep.subr.mxu0 0.0
  %746 = vmatpush2.msra.mxu0 %v54
  %747 = vmatprep.subr.mxu0 0.0
  %748 = vmatpush2.msra.mxu0 %v53
  %749 = vmatprep.subr.mxu0 0.0
  %750 = vmatpush2.msra.mxu0 %v52
  %751 = vmatprep.subr.mxu0 0.0
  %752 = vmatpush2.msra.mxu0 %v51
  %753 = vmatprep.subr.mxu0 0.0
  %754 = vmatpush2.msra.mxu0 %v50
  %755 = vmatprep.subr.mxu0 0.0
  %756 = vmatpush2.msra.mxu0 %v49
  %757 = vmatprep.subr.mxu0 0.0
  %758 = vmatpush2.msra.mxu0 %v48
  %759 = vmatprep.subr.mxu0 0.0
  %760 = vmatpush2.msra.mxu0 %v47
  %761 = vmatprep.subr.mxu0 0.0
  %762 = vmatpush2.msra.mxu0 %v46
  %763 = vmatprep.subr.mxu0 0.0
  %764 = vmatpush2.msra.mxu0 %v45
  %765 = vmatprep.subr.mxu0 0.0
  %766 = vmatpush2.msra.mxu0 %v44
  %767 = vmatprep.subr.mxu0 0.0
  %768 = vmatpush2.msra.mxu0 %v43
  %769 = vmatprep.subr.mxu0 0.0
  %770 = vmatpush2.msra.mxu0 %v42
  %771 = vmatprep.subr.mxu0 0.0
  %772 = vmatpush2.msra.mxu0 %v41
  %773 = vmatprep.mubr.f32.mxu0 %v626
  %774 = vmatmul.mubr.f32.gmra.mxu0 %v555
  %v775 = vpop.f32.mrf.mxu0
  %v776 = vadd.f32 %v229, %v775
  %v777 = vpop.f32.mrf.mxu0
  %778 = vmatprep.mubr.f32.mxu0 %v631
  %779 = vmatmul.mubr.f32.gmra.mxu0 %v556
  %v780 = vpop.f32.mrf.mxu0
  %v781 = vadd.f32 %v229, %v780
  %v782 = vpop.f32.mrf.mxu0
  %783 = vmatprep.mubr.f32.mxu0 %v701
  %784 = vmatmul.mubr.f32.gmra.mxu0 %v557
  %v785 = vpop.f32.mrf.mxu0
  %v786 = vadd.f32 %v229, %v785
  %v787 = vpop.f32.mrf.mxu0
  %788 = vmatprep.mubr.f32.mxu0 %v706
  %789 = vmatmul.mubr.f32.gmra.mxu0 %v558
  %v790 = vpop.f32.mrf.mxu0
  %v791 = vadd.f32 %v229, %v790
  %v792 = vpop.f32.mrf.mxu0
  %793 = vdwg.mxu0
  %v794 = vmax.f32 %v776, 0.0
  %v795 = vmax.f32 %v781, 0.0
  %v796 = vmax.f32 %v786, 0.0
  %v797 = vmax.f32 %v791, 0.0
  %v798 = vadd.f32 %v794, %v795
  %v799 = vrot.slane %v798, 4
  %v800 = vadd.f32 %v798, %v799
  %v801 = vrot.slane %v800, 2
  %v802 = vadd.f32 %v800, %v801
  %v803 = vrot.slane %v802, 1
  %v804 = vadd.f32 %v802, %v803
  %v805 = vadd.f32 %v796, %v797
  %v806 = vrot.slane %v805, 4
  %v807 = vadd.f32 %v805, %v806
  %v808 = vrot.slane %v807, 2
  %v809 = vadd.f32 %v807, %v808
  %v810 = vrot.slane %v809, 1
  %v811 = vadd.f32 %v809, %v810
  %vm814 = vcmask 1041409
  %v815 = vsel %vm814, %v811, %v804
  %817 = vst [vmem:[%s4] sm:$0x3] %v815
  // Predicated region
  $region18: #{mpnn_forward.1} parent=0 // pred_check
    _
  $region19: #{mpnn_forward.1} parent=0 // pred_check_branch
    %819 = sbr.rel (0) target = $region21
  $region20: #{mpnn_forward.1} parent=0 // pred_region
    _
  $region21: #{mpnn_forward.1} parent=0 // pred_fallthru
    _
  // Predicated region
  $region22: #{mpnn_forward.1} parent=0 // pred_check
    _
  $region23: #{mpnn_forward.1} parent=0 // pred_check_branch
    %821 = sbr.rel (0) target = $region25
  $region24: #{mpnn_forward.1} parent=0 // pred_region
    _
  $region25: #{mpnn_forward.1} parent=0 // pred_fallthru
    _

</llo_original>
